<compile_context>
chip_gen: v7x
topology: tpu7x:2x2x1
jax: 0.10.0
libtpu: 0.0.40
codegen_flags: <defaults>
</compile_context>

<pallas_src>
import functools

import jax
import jax.numpy as jnp
from jax.experimental import pallas as pl
from jax.experimental.pallas import tpu as pltpu

_PACK = 8          # batch rows packed per row-group
_CHUNK_G = 256     # row-groups per inner-loop chunk (2048 batch rows)


def _critic_kernel(x_ref, w1_ref, b1_ref, w2_ref, b2_ref, w3_ref, b3_ref,
                   o_ref, *, chunk, n_chunks):
    """One grid step: `tile_g` row-groups, processed in `n_chunks` chunks of
    `chunk` row-groups to bound live vector registers."""
    cd = w1_ref.dtype                     # MXU operand dtype (f32 or bf16)

    @pl.loop(0, n_chunks)
    def _(c):
        r0 = pl.multiple_of(c * chunk, chunk)
        xg = x_ref[pl.ds(r0, chunk), :]                       # [chunk, 8*S]
        # Layer 1 (+ReLU): block-diag W1 == per-row Linear(state_dim, f1).
        h1 = jnp.dot(xg, w1_ref[...], preferred_element_type=jnp.float32)
        h1 = jnp.maximum(h1 + b1_ref[...], 0.0)                # [chunk, 8*f1]
        # Layer 2 (+ReLU).
        h2 = jnp.dot(h1.astype(cd), w2_ref[...],
                     preferred_element_type=jnp.float32)
        h2 = jnp.maximum(h2 + b2_ref[...], 0.0)                # [chunk, 8*f2]
        # Layer 3 (value head): block-diag w3 -> one scalar per packed row.
        v = jnp.dot(h2.astype(cd), w3_ref[...],
                    preferred_element_type=jnp.float32)        # [chunk, 8]
        o_ref[pl.ds(r0, chunk), :] = (v + b3_ref[...]).astype(o_ref.dtype)


def _resident(a):
    """Whole-array block with a constant index_map -> stays resident in VMEM."""
    return pl.BlockSpec(a.shape, lambda i: (0,) * a.ndim,
                        memory_space=pltpu.VMEM)


def _round_tile(t, total):
    """Clamp/round a row-group tile so the (8,128) block rules hold."""
    t = max(1, min(t, total))
    if t >= _CHUNK_G:
        return t - t % _CHUNK_G
    if t >= 8:
        return t - t % 8
    return t if t == total else min(8, total)


def critic_forward(x, params, *, tile_rows=None, compute_dtype=jnp.float32):
    """Fused Critic MLP as a single batch-tiled Pallas kernel.

    x:       [batch, state_dim] float32
    params:  dict with w1 [S,f1], b1 [1,f1], w2 [f1,f2], b2 [1,f2],
             w3 [f2,1], b3 [1,1]   (weights transposed vs. PyTorch)
    tile_rows:     batch rows per grid step (default: auto-sized).
    compute_dtype: MXU operand dtype. float32 (default) matches PyTorch
             numerics; bfloat16 halves x's HBM traffic and is full MXU rate on
             v6e/v7x (accumulation / bias / ReLU remain f32).
    returns: [batch, 1] float32
    """
    batch, state_dim = x.shape
    f1 = params["w1"].shape[1]
    f2 = params["w2"].shape[1]
    itemsize = jnp.dtype(compute_dtype).itemsize

    # --- Pack 8 rows per group; expand weights to block-diagonal form. ------
    groups = -(-batch // _PACK)
    if groups * _PACK != batch:              # rare: pad batch to a multiple of 8
        x = jnp.pad(x, ((0, groups * _PACK - batch), (0, 0)))
    x2 = x.reshape(groups, _PACK * state_dim).astype(compute_dtype)

    eye = jnp.eye(_PACK, dtype=jnp.float32)
    w1 = jnp.kron(eye, params["w1"]).astype(compute_dtype)    # [8S , 8f1]
    w2 = jnp.kron(eye, params["w2"]).astype(compute_dtype)    # [8f1, 8f2]
    w3 = jnp.kron(eye, params["w3"]).astype(compute_dtype)    # [8f2, 8  ]
    b1 = jnp.tile(params["b1"], (1, _PACK))                   # [1, 8f1] f32
    b2 = jnp.tile(params["b2"], (1, _PACK))                   # [1, 8f2] f32
    b3 = jnp.tile(params["b3"], (1, _PACK))                   # [1, 8  ] f32

    # --- Tile selection ------------------------------------------------------
    row_bytes = _PACK * state_dim * itemsize
    if tile_rows is None:
        # ~2 MiB of x per grid step amortizes the ~0.35 us/step pipeline
        # overhead; >= ~4 steps keeps both v7x TCs busy and DMAs pipelined;
        # 4096 groups (32768 rows) caps the VMEM footprint on all chips.
        tile_g = min(4096, max(1, (2 << 20) // row_bytes), max(1, groups // 4))
    else:
        tile_g = max(1, -(-int(tile_rows) // _PACK))
    tile_g = _round_tile(tile_g, groups)
    chunk_g = tile_g if tile_g < _CHUNK_G else _CHUNK_G
    n_chunks = tile_g // chunk_g
    num_tiles = pl.cdiv(groups, tile_g)

    # --- VMEM budget (lane-padding aware) & scheduler cost hint --------------
    lane_pad = lambda n: -(-n // 128) * 128
    vmem_need = (2 * tile_g * lane_pad(_PACK * state_dim) * itemsize   # x tile x2 buffers
                 + 2 * tile_g * lane_pad(_PACK) * 4                    # out tile x2 buffers
                 + 2 * (w1.size + w2.size + w3.size) * itemsize        # resident weights
                 + (8 << 20))                                          # chunk intermediates + headroom
    vmem_limit = int(min(112 << 20, max(32 << 20, vmem_need)))

    cost = pl.CostEstimate(
        flops=2 * batch * (state_dim * f1 + f1 * f2 + f2),
        transcendentals=0,
        bytes_accessed=int(x2.size * itemsize + groups * _PACK * 4
                           + (w1.size + w2.size + w3.size) * itemsize
                           + (b1.size + b2.size + b3.size) * 4))

    out = pl.pallas_call(
        functools.partial(_critic_kernel, chunk=chunk_g, n_chunks=n_chunks),
        out_shape=jax.ShapeDtypeStruct((groups, _PACK), jnp.float32),
        grid=(num_tiles,),
        in_specs=[
            pl.BlockSpec((tile_g, _PACK * state_dim), lambda i: (i, 0),
                         memory_space=pltpu.VMEM),            # x2: tiled over groups
            _resident(w1), _resident(b1),
            _resident(w2), _resident(b2),
            _resident(w3), _resident(b3),
        ],
        out_specs=pl.BlockSpec((tile_g, _PACK), lambda i: (i, 0),
                               memory_space=pltpu.VMEM),
        compiler_params=pltpu.CompilerParams(
            dimension_semantics=("parallel",),
            vmem_limit_bytes=vmem_limit),
        cost_estimate=cost,
    )(x2, w1, b1, w2, b2, w3, b3)

    # [groups, 8] -> [groups*8, 1] -> drop rows added by the 8-row padding.
    return out.reshape(groups * _PACK, 1)[:batch]


def init_critic_params(state_dim, f1=32, f2=16, seed=0):
    """Mimics PyTorch nn.Linear default init: U(-1/sqrt(fan_in), 1/sqrt(fan_in))."""
    key = jax.random.PRNGKey(seed)
    ks = jax.random.split(key, 6)

    def lin(kw, kb, fan_in, fan_out):
        bound = 1.0 / jnp.sqrt(jnp.float32(fan_in))
        w = jax.random.uniform(kw, (fan_in, fan_out), jnp.float32, -bound, bound)
        b = jax.random.uniform(kb, (1, fan_out), jnp.float32, -bound, bound)
        return w, b

    w1, b1 = lin(ks[0], ks[1], state_dim, f1)
    w2, b2 = lin(ks[2], ks[3], f1, f2)
    w3, b3 = lin(ks[4], ks[5], f2, 1)
    return {"w1": w1, "b1": b1, "w2": w2, "b2": b2, "w3": w3, "b3": b3}


def _reference(x, p):
    # Pure-JAX reference (exact PyTorch forward semantics in f32).
    h1 = jnp.maximum(x @ p["w1"] + p["b1"], 0.0)
    h2 = jnp.maximum(h1 @ p["w2"] + p["b2"], 0.0)
    return h2 @ p["w3"] + p["b3"]


if __name__ == "__main__":
    state_dim = 16
    params = init_critic_params(state_dim, f1=32, f2=16, seed=0)
    k0, k1, k2 = jax.random.split(jax.random.PRNGKey(0), 3)

    # Small shape: single row-group, single grid step.
    x_small = jax.random.normal(k0, (8, state_dim), dtype=jnp.float32)
    out_small = jax.block_until_ready(critic_forward(x_small, params))
    assert out_small.shape == (8, 1)
    assert jnp.allclose(out_small, _reference(x_small, params),
                        atol=1e-5, rtol=1e-5)

    # Ragged batch (not a multiple of 8) exercises the padding path.
    x_rag = jax.random.normal(k1, (10, state_dim), dtype=jnp.float32)
    out_rag = jax.block_until_ready(critic_forward(x_rag, params))
    assert out_rag.shape == (10, 1)
    assert jnp.allclose(out_rag, _reference(x_rag, params),
                        atol=1e-5, rtol=1e-5)

    # Larger batch exercises the multi-step grid (4 grid steps here).
    x_big = jax.random.normal(k2, (2048, state_dim), dtype=jnp.float32)
    ref_big = _reference(x_big, params)
    out_big = jax.block_until_ready(critic_forward(x_big, params))
    assert out_big.shape == (2048, 1)
    assert jnp.allclose(out_big, ref_big, atol=1e-5, rtol=1e-5)

    # bf16 matmul operands (v6e/v7x fast path), f32 accumulate -> loose check.
    out_bf16 = jax.block_until_ready(
        critic_forward(x_big, params, compute_dtype=jnp.bfloat16))
    assert out_bf16.shape == (2048, 1)
    assert bool(jnp.all(jnp.isfinite(out_bf16)))
    assert jnp.allclose(out_bf16, ref_big, atol=1e-1, rtol=1e-1)

    print("KERNEL_OK")
</pallas_src>

<mosaic_0001>
module attributes {stable_mosaic.version = 11 : i64} {
  func.func @_critic_kernel(%arg0: i32, %arg1: memref<1x128xf32, #tpu.memory_space<vmem>>, %arg2: memref<128x256xf32, #tpu.memory_space<vmem>>, %arg3: memref<1x256xf32, #tpu.memory_space<vmem>>, %arg4: memref<256x128xf32, #tpu.memory_space<vmem>>, %arg5: memref<1x128xf32, #tpu.memory_space<vmem>>, %arg6: memref<128x8xf32, #tpu.memory_space<vmem>>, %arg7: memref<1x8xf32, #tpu.memory_space<vmem>>, %arg8: memref<1x8xf32, #tpu.memory_space<vmem>>) attributes {dimension_semantics = [#tpu.dimension_semantics<parallel>], iteration_bounds = array<i64: 1>, scalar_prefetch = 0 : i64, scratch_operands = 0 : i64, tpu.core_type = #tpu.core_type<tc>, window_params = [{transform_indices = @transform_0, window_bounds = array<i64: 1, 128>}, {pipeline_mode = #tpu.pipeline_mode<synchronous>, transform_indices = @transform_1, window_bounds = array<i64: 128, 256>}, {pipeline_mode = #tpu.pipeline_mode<synchronous>, transform_indices = @transform_2, window_bounds = array<i64: 1, 256>}, {pipeline_mode = #tpu.pipeline_mode<synchronous>, transform_indices = @transform_3, window_bounds = array<i64: 256, 128>}, {pipeline_mode = #tpu.pipeline_mode<synchronous>, transform_indices = @transform_4, window_bounds = array<i64: 1, 128>}, {pipeline_mode = #tpu.pipeline_mode<synchronous>, transform_indices = @transform_5, window_bounds = array<i64: 128, 8>}, {pipeline_mode = #tpu.pipeline_mode<synchronous>, transform_indices = @transform_6, window_bounds = array<i64: 1, 8>}, {transform_indices = @transform_7, window_bounds = array<i64: 1, 8>}]} {
    %c0_i32 = arith.constant 0 : i32
    %c1_i32 = arith.constant 1 : i32
    %0 = arith.muli %c0_i32, %c1_i32 : i32
    %c0_i32_0 = arith.constant 0 : i32
    %1 = arith.addi %c0_i32_0, %0 : i32
    %c1_i32_1 = arith.constant 1 : i32
    %2 = arith.muli %1, %c1_i32_1 : i32
    %3 = tpu.assume_multiple %2, 1 : i32
    %4 = arith.index_cast %3 : i32 to index
    %c0 = arith.constant 0 : index
    %5 = vector.load %arg1[%4, %c0] : memref<1x128xf32, #tpu.memory_space<vmem>>, vector<1x128xf32>
    %c0_2 = arith.constant 0 : index
    %c0_3 = arith.constant 0 : index
    %6 = vector.load %arg2[%c0_2, %c0_3] : memref<128x256xf32, #tpu.memory_space<vmem>>, vector<128x256xf32>
    %cst = arith.constant dense<0.000000e+00> : vector<1x256xf32>
    %7 = tpu.matmul %5, %6, %cst {dimension_numbers = #tpu.dot_dimension_numbers<[1], [0], [0], [1], [0, 0, 1, 1], [], []>} : vector<1x128xf32>, vector<128x256xf32>, vector<1x256xf32> -> vector<1x256xf32>
    %c0_4 = arith.constant 0 : index
    %c0_5 = arith.constant 0 : index
    %8 = vector.load %arg3[%c0_4, %c0_5] : memref<1x256xf32, #tpu.memory_space<vmem>>, vector<1x256xf32>
    %9 = arith.addf %7, %8 : vector<1x256xf32>
    %cst_6 = arith.constant 0.000000e+00 : f32
    %10 = vector.broadcast %cst_6 : f32 to vector<1x256xf32>
    %11 = arith.maximumf %9, %10 : vector<1x256xf32>
    %c0_7 = arith.constant 0 : index
    %c0_8 = arith.constant 0 : index
    %12 = vector.load %arg4[%c0_7, %c0_8] : memref<256x128xf32, #tpu.memory_space<vmem>>, vector<256x128xf32>
    %cst_9 = arith.constant dense<0.000000e+00> : vector<1x128xf32>
    %13 = tpu.matmul %11, %12, %cst_9 {dimension_numbers = #tpu.dot_dimension_numbers<[1], [0], [0], [1], [0, 0, 1, 1], [], []>} : vector<1x256xf32>, vector<256x128xf32>, vector<1x128xf32> -> vector<1x128xf32>
    %c0_10 = arith.constant 0 : index
    %c0_11 = arith.constant 0 : index
    %14 = vector.load %arg5[%c0_10, %c0_11] : memref<1x128xf32, #tpu.memory_space<vmem>>, vector<1x128xf32>
    %15 = arith.addf %13, %14 : vector<1x128xf32>
    %cst_12 = arith.constant 0.000000e+00 : f32
    %16 = vector.broadcast %cst_12 : f32 to vector<1x128xf32>
    %17 = arith.maximumf %15, %16 : vector<1x128xf32>
    %c0_13 = arith.constant 0 : index
    %c0_14 = arith.constant 0 : index
    %18 = vector.load %arg6[%c0_13, %c0_14] : memref<128x8xf32, #tpu.memory_space<vmem>>, vector<128x8xf32>
    %cst_15 = arith.constant dense<0.000000e+00> : vector<1x8xf32>
    %19 = tpu.matmul %17, %18, %cst_15 {dimension_numbers = #tpu.dot_dimension_numbers<[1], [0], [0], [1], [0, 0, 1, 1], [], []>} : vector<1x128xf32>, vector<128x8xf32>, vector<1x8xf32> -> vector<1x8xf32>
    %c0_16 = arith.constant 0 : index
    %c0_17 = arith.constant 0 : index
    %20 = vector.load %arg7[%c0_16, %c0_17] : memref<1x8xf32, #tpu.memory_space<vmem>>, vector<1x8xf32>
    %21 = arith.addf %19, %20 : vector<1x8xf32>
    %22 = arith.index_cast %3 : i32 to index
    %c0_18 = arith.constant 0 : index
    %23 = vector.load %arg8[%22, %c0_18] : memref<1x8xf32, #tpu.memory_space<vmem>>, vector<1x8xf32>
    tpu.vector_store %arg8[%22, %c0_18], %21 {strides = array<i32>} : memref<1x8xf32, #tpu.memory_space<vmem>>, vector<1x8xf32>,
    %c1_i32_19 = arith.constant 1 : i32
    return
  }
  func.func @transform_0(%arg0: i32) -> (i32, i32) {
    %c0_i32 = arith.constant 0 : i32
    %c0_i32_0 = arith.constant 0 : i32
    return %arg0, %c0_i32 : i32, i32
  }
  func.func @transform_1(%arg0: i32) -> (i32, i32) {
    %c0_i32 = arith.constant 0 : i32
    %c0_i32_0 = arith.constant 0 : i32
    %c0_i32_1 = arith.constant 0 : i32
    return %c0_i32, %c0_i32_0 : i32, i32
  }
  func.func @transform_2(%arg0: i32) -> (i32, i32) {
    %c0_i32 = arith.constant 0 : i32
    %c0_i32_0 = arith.constant 0 : i32
    %c0_i32_1 = arith.constant 0 : i32
    return %c0_i32, %c0_i32_0 : i32, i32
  }
  func.func @transform_3(%arg0: i32) -> (i32, i32) {
    %c0_i32 = arith.constant 0 : i32
    %c0_i32_0 = arith.constant 0 : i32
    %c0_i32_1 = arith.constant 0 : i32
    return %c0_i32, %c0_i32_0 : i32, i32
  }
  func.func @transform_4(%arg0: i32) -> (i32, i32) {
    %c0_i32 = arith.constant 0 : i32
    %c0_i32_0 = arith.constant 0 : i32
    %c0_i32_1 = arith.constant 0 : i32
    return %c0_i32, %c0_i32_0 : i32, i32
  }
  func.func @transform_5(%arg0: i32) -> (i32, i32) {
    %c0_i32 = arith.constant 0 : i32
    %c0_i32_0 = arith.constant 0 : i32
    %c0_i32_1 = arith.constant 0 : i32
    return %c0_i32, %c0_i32_0 : i32, i32
  }
  func.func @transform_6(%arg0: i32) -> (i32, i32) {
    %c0_i32 = arith.constant 0 : i32
    %c0_i32_0 = arith.constant 0 : i32
    %c0_i32_1 = arith.constant 0 : i32
    return %c0_i32, %c0_i32_0 : i32, i32
  }
  func.func @transform_7(%arg0: i32) -> (i32, i32) {
    %c0_i32 = arith.constant 0 : i32
    %c0_i32_0 = arith.constant 0 : i32
    return %arg0, %c0_i32 : i32, i32
  }
}

</mosaic_0001>

<llo_original>
// kernel: tpu_custom_call.1
$region0: #{tpu_custom_call.1}
  #allocation0 [shape = 'u32[]', space=smem, size = 0x4, offset = 0x4, fixed_abs, tag = 'smem constant byte address 0x4 - core index']
  #allocation1 [shape = 'u32[144,128]{1,0:T(1,128)}', space=vmem, size = 0x12000, scoped, tag = 'internal scratch']
  %s0 = inlined_call_operand.vmem [shape: f32[1,128], index: 0, kind: input, shape index: {}]
  %s1 = inlined_call_operand.hbm [shape: f32[128,256], index: 1, kind: input, shape index: {}]
  %s2 = inlined_call_operand.vmem [shape: f32[1,256], index: 2, kind: input, shape index: {}]
  %s3 = inlined_call_operand.hbm [shape: f32[256,128], index: 3, kind: input, shape index: {}]
  %s4 = inlined_call_operand.vmem [shape: f32[1,128], index: 4, kind: input, shape index: {}]
  %s5 = inlined_call_operand.vmem [shape: f32[128,8], index: 5, kind: input, shape index: {}]
  %s6 = inlined_call_operand.vmem [shape: f32[1,8], index: 6, kind: input, shape index: {}]
  %s7 = inlined_call_operand.hbm [shape: f32[1,8], index: 7, kind: output, shape index: {}]
  %s8 = sld [smem:[#allocation0]]
  $region46: #{tpu_custom_call.1} parent=0
    _
  %s10 = ssub.s32 1, %s8
  %s11 = scalar_select 0, %s10, %s8
  $region1: #{tpu_custom_call.1} parent=0
    #allocation2 [shape = 'u8[131072]{0}', space=vmem, size = 0x20000, scoped, tag = 'input window, operand 1, single buffered']
    #allocation3 [shape = 's32[1]{0}', space=sflag, size = 0x4, scoped, tag = 'scoped memory for tpu_custom_call.1']
    #allocation4 [shape = 's32[1]{0}', space=sflag, size = 0x4, scoped, tag = 'scoped memory for tpu_custom_call.1']
    #allocation5 [shape = 'u8[131072]{0}', space=vmem, size = 0x20000, scoped, tag = 'input window, operand 3, single buffered']
    #allocation6 [shape = 's32[1]{0}', space=sflag, size = 0x4, scoped, tag = 'scoped memory for tpu_custom_call.1']
    #allocation7 [shape = 'u8[512]{0}', space=vmem, size = 0x400, scoped, tag = 'output window, operand 0, single buffered']
    %12 = vsyncpa [#allocation3], 0
    %13 = vsyncpa [#allocation6], 0
    %14 = vsyncpa [#allocation4], 0
    // Predicated region
    $region2: #{tpu_custom_call.1} parent=1 // pred_check
      _
    $region3: #{tpu_custom_call.1} parent=1 // pred_check_branch
      %16 = sbr.rel (0) target = $region5
    $region4: #{tpu_custom_call.1} parent=1 // pred_region
      _
    $region5: #{tpu_custom_call.1} parent=1 // pred_fallthru
      _
    // Predicated region
    $region6: #{tpu_custom_call.1} parent=1 // pred_check
      _
    $region7: #{tpu_custom_call.1} parent=1 // pred_check_branch
      %18 = sbr.rel (0) target = $region9
    $region8: #{tpu_custom_call.1} parent=1 // pred_region
      %s20 = ssub.s32 4096, 4096
      %21 = vsyncadd [#allocation3], %s20
      %s22 = sshll.u32 [#allocation2], 4
      %s23 = int_to_ptr.vmem [resolvable:$true] %s22
      %28 = dma.hbm_to_vmem [thread:$0]  %s1, 4096, %s23, [#allocation3], 256, 256, 16
    $region9: #{tpu_custom_call.1} parent=1 // pred_fallthru
      _
    // Predicated region
    $region10: #{tpu_custom_call.1} parent=1 // pred_check
      _
    $region11: #{tpu_custom_call.1} parent=1 // pred_check_branch
      %30 = sbr.rel (0) target = $region13
    $region12: #{tpu_custom_call.1} parent=1 // pred_region
      _
    $region13: #{tpu_custom_call.1} parent=1 // pred_fallthru
      _
    // Predicated region
    $region14: #{tpu_custom_call.1} parent=1 // pred_check
      _
    $region15: #{tpu_custom_call.1} parent=1 // pred_check_branch
      %32 = sbr.rel (0) target = $region17
    $region16: #{tpu_custom_call.1} parent=1 // pred_region
      %s34 = ssub.s32 4096, 4096
      %35 = vsyncadd [#allocation6], %s34
      %s36 = sshll.u32 [#allocation5], 4
      %s37 = int_to_ptr.vmem [resolvable:$true] %s36
      %42 = dma.hbm_to_vmem [thread:$0]  %s3, 4096, %s37, [#allocation6], 128, 128, 8
    $region17: #{tpu_custom_call.1} parent=1 // pred_fallthru
      _
    // Predicated region
    $region18: #{tpu_custom_call.1} parent=1 // pred_check
      _
    $region19: #{tpu_custom_call.1} parent=1 // pred_check_branch
      %44 = sbr.rel (0) target = $region21
    $region20: #{tpu_custom_call.1} parent=1 // pred_region
      _
    $region21: #{tpu_custom_call.1} parent=1 // pred_fallthru
      _
    // Predicated region
    $region22: #{tpu_custom_call.1} parent=1 // pred_check
      _
    $region23: #{tpu_custom_call.1} parent=1 // pred_check_branch
      %46 = sbr.rel (0) target = $region25
    $region24: #{tpu_custom_call.1} parent=1 // pred_region
      _
    $region25: #{tpu_custom_call.1} parent=1 // pred_fallthru
      _
    // Predicated region
    $region26: #{tpu_custom_call.1} parent=1 // pred_check
      _
    $region27: #{tpu_custom_call.1} parent=1 // pred_check_branch
      %48 = sbr.rel (0) target = $region29
    $region28: #{tpu_custom_call.1} parent=1 // pred_region
      _
    $region29: #{tpu_custom_call.1} parent=1 // pred_fallthru
      _
    // Predicated region
    $region30: #{tpu_custom_call.1} parent=1 // pred_check
      _
    $region31: #{tpu_custom_call.1} parent=1 // pred_check_branch
      %50 = sbr.rel (0) target = $region33
    $region32: #{tpu_custom_call.1} parent=1 // pred_region
      %51 = dma.done [#allocation3], 4096
    $region33: #{tpu_custom_call.1} parent=1 // pred_fallthru
      _
    // Predicated region
    $region34: #{tpu_custom_call.1} parent=1 // pred_check
      _
    $region35: #{tpu_custom_call.1} parent=1 // pred_check_branch
      %53 = sbr.rel (0) target = $region37
    $region36: #{tpu_custom_call.1} parent=1 // pred_region
      %54 = dma.done [#allocation6], 4096
    $region37: #{tpu_custom_call.1} parent=1 // pred_fallthru
      _
    %v55 = vld [vmem:[%s0] sm:$0x1]
    %v56 = vld [vmem:[#allocation2] sm:$0xff]
    %v57 = vld [vmem:[#allocation2 + $0x8] sm:$0xff]
    %v58 = vld [vmem:[#allocation2 + $0x10] sm:$0xff]
    %v59 = vld [vmem:[#allocation2 + $0x18] sm:$0xff]
    %v60 = vld [vmem:[#allocation2 + $0x20] sm:$0xff]
    %v61 = vld [vmem:[#allocation2 + $0x28] sm:$0xff]
    %v62 = vld [vmem:[#allocation2 + $0x30] sm:$0xff]
    %v63 = vld [vmem:[#allocation2 + $0x38] sm:$0xff]
    %v64 = vld [vmem:[#allocation2 + $0x40] sm:$0xff]
    %v65 = vld [vmem:[#allocation2 + $0x48] sm:$0xff]
    %v66 = vld [vmem:[#allocation2 + $0x50] sm:$0xff]
    %v67 = vld [vmem:[#allocation2 + $0x58] sm:$0xff]
    %v68 = vld [vmem:[#allocation2 + $0x60] sm:$0xff]
    %v69 = vld [vmem:[#allocation2 + $0x68] sm:$0xff]
    %v70 = vld [vmem:[#allocation2 + $0x70] sm:$0xff]
    %v71 = vld [vmem:[#allocation2 + $0x78] sm:$0xff]
    %v72 = vld [vmem:[#allocation2 + $0x80] sm:$0xff]
    %v73 = vld [vmem:[#allocation2 + $0x88] sm:$0xff]
    %v74 = vld [vmem:[#allocation2 + $0x90] sm:$0xff]
    %v75 = vld [vmem:[#allocation2 + $0x98] sm:$0xff]
    %v76 = vld [vmem:[#allocation2 + $0xa0] sm:$0xff]
    %v77 = vld [vmem:[#allocation2 + $0xa8] sm:$0xff]
    %v78 = vld [vmem:[#allocation2 + $0xb0] sm:$0xff]
    %v79 = vld [vmem:[#allocation2 + $0xb8] sm:$0xff]
    %v80 = vld [vmem:[#allocation2 + $0xc0] sm:$0xff]
    %v81 = vld [vmem:[#allocation2 + $0xc8] sm:$0xff]
    %v82 = vld [vmem:[#allocation2 + $0xd0] sm:$0xff]
    %v83 = vld [vmem:[#allocation2 + $0xd8] sm:$0xff]
    %v84 = vld [vmem:[#allocation2 + $0xe0] sm:$0xff]
    %v85 = vld [vmem:[#allocation2 + $0xe8] sm:$0xff]
    %v86 = vld [vmem:[#allocation2 + $0xf0] sm:$0xff]
    %v87 = vld [vmem:[#allocation2 + $0xf8] sm:$0xff]
    %v88 = vld [vmem:[%s2] sm:$0x3]
    %v90 = vlaneseq
    %v91 = vshrl.u32 %v90, 7
    %v92 = vsub.s32 0, %v91
    %v93 = vrot.slane %v88, %v92
    %v94 = vlaneseq
    %v95 = vshrl.u32 %v94, 7
    %v96 = vsub.s32 1, %v95
    %v97 = vrot.slane %v88, %v96
    %100 = vmatprep.subr.mxu0 %v57
    %101 = vmatpush1.msra.mxu0 %v56
    %102 = vmatprep.subr.mxu0 %v59
    %103 = vmatpush1.msra.mxu0 %v58
    %104 = vmatprep.subr.mxu0 %v61
    %105 = vmatpush1.msra.mxu0 %v60
    %106 = vmatprep.subr.mxu0 %v63
    %107 = vmatpush1.msra.mxu0 %v62
    %108 = vmatprep.subr.mxu0 %v65
    %109 = vmatpush1.msra.mxu0 %v64
    %110 = vmatprep.subr.mxu0 %v67
    %111 = vmatpush1.msra.mxu0 %v66
    %112 = vmatprep.subr.mxu0 %v69
    %113 = vmatpush1.msra.mxu0 %v68
    %114 = vmatprep.subr.mxu0 %v71
    %115 = vmatpush1.msra.mxu0 %v70
    %116 = vmatprep.subr.mxu0 %v73
    %117 = vmatpush1.msra.mxu0 %v72
    %118 = vmatprep.subr.mxu0 %v75
    %119 = vmatpush1.msra.mxu0 %v74
    %120 = vmatprep.subr.mxu0 %v77
    %121 = vmatpush1.msra.mxu0 %v76
    %122 = vmatprep.subr.mxu0 %v79
    %123 = vmatpush1.msra.mxu0 %v78
    %124 = vmatprep.subr.mxu0 %v81
    %125 = vmatpush1.msra.mxu0 %v80
    %126 = vmatprep.subr.mxu0 %v83
    %127 = vmatpush1.msra.mxu0 %v82
    %128 = vmatprep.subr.mxu0 %v85
    %129 = vmatpush1.msra.mxu0 %v84
    %130 = vmatprep.subr.mxu0 %v87
    %131 = vmatpush1.msra.mxu0 %v86
    %132 = vmatprep.subr.mxu0 0.0
    %133 = vmatpush1.msra.mxu0 0.0
    %134 = vmatprep.subr.mxu0 0.0
    %135 = vmatpush1.msra.mxu0 0.0
    %136 = vmatprep.subr.mxu0 0.0
    %137 = vmatpush1.msra.mxu0 0.0
    %138 = vmatprep.subr.mxu0 0.0
    %139 = vmatpush1.msra.mxu0 0.0
    %140 = vmatprep.subr.mxu0 0.0
    %141 = vmatpush1.msra.mxu0 0.0
    %142 = vmatprep.subr.mxu0 0.0
    %143 = vmatpush1.msra.mxu0 0.0
    %144 = vmatprep.subr.mxu0 0.0
    %145 = vmatpush1.msra.mxu0 0.0
    %146 = vmatprep.subr.mxu0 0.0
    %147 = vmatpush1.msra.mxu0 0.0
    %148 = vmatprep.subr.mxu0 0.0
    %149 = vmatpush1.msra.mxu0 0.0
    %150 = vmatprep.subr.mxu0 0.0
    %151 = vmatpush1.msra.mxu0 0.0
    %152 = vmatprep.subr.mxu0 0.0
    %153 = vmatpush1.msra.mxu0 0.0
    %154 = vmatprep.subr.mxu0 0.0
    %155 = vmatpush1.msra.mxu0 0.0
    %156 = vmatprep.subr.mxu0 0.0
    %157 = vmatpush1.msra.mxu0 0.0
    %158 = vmatprep.subr.mxu0 0.0
    %159 = vmatpush1.msra.mxu0 0.0
    %160 = vmatprep.subr.mxu0 0.0
    %161 = vmatpush1.msra.mxu0 0.0
    %162 = vmatprep.subr.mxu0 0.0
    %163 = vmatpush1.msra.mxu0 0.0
    %164 = vmatprep.mubr.f32.mxu0 0.0
    %165 = vmatmul.mubr.f32.gmra.mrb[0].mxu0 %v55
    %v166 = vpop.f32.mrb[0].mxu0
    %v167 = vadd.f32 %v93, %v166
    %v168 = vpop.f32.mrb[0].mxu0
    %v169 = vadd.f32 %v97, %v168
    %170 = vdwg.mxu0
    %v171 = vmax.f32 %v167, 0.0
    %v172 = vmax.f32 %v169, 0.0
    %v173 = vld [vmem:[#allocation5] sm:$0xff]
    %v174 = vld [vmem:[#allocation5 + $0x8] sm:$0xff]
    %v175 = vld [vmem:[#allocation5 + $0x10] sm:$0xff]
    %v176 = vld [vmem:[#allocation5 + $0x18] sm:$0xff]
    %v177 = vld [vmem:[#allocation5 + $0x20] sm:$0xff]
    %v178 = vld [vmem:[#allocation5 + $0x28] sm:$0xff]
    %v179 = vld [vmem:[#allocation5 + $0x30] sm:$0xff]
    %v180 = vld [vmem:[#allocation5 + $0x38] sm:$0xff]
    %v181 = vld [vmem:[#allocation5 + $0x40] sm:$0xff]
    %v182 = vld [vmem:[#allocation5 + $0x48] sm:$0xff]
    %v183 = vld [vmem:[#allocation5 + $0x50] sm:$0xff]
    %v184 = vld [vmem:[#allocation5 + $0x58] sm:$0xff]
    %v185 = vld [vmem:[#allocation5 + $0x60] sm:$0xff]
    %v186 = vld [vmem:[#allocation5 + $0x68] sm:$0xff]
    %v187 = vld [vmem:[#allocation5 + $0x70] sm:$0xff]
    %v188 = vld [vmem:[#allocation5 + $0x78] sm:$0xff]
    %v189 = vld [vmem:[#allocation5 + $0x80] sm:$0xff]
    %v190 = vld [vmem:[#allocation5 + $0x88] sm:$0xff]
    %v191 = vld [vmem:[#allocation5 + $0x90] sm:$0xff]
    %v192 = vld [vmem:[#allocation5 + $0x98] sm:$0xff]
    %v193 = vld [vmem:[#allocation5 + $0xa0] sm:$0xff]
    %v194 = vld [vmem:[#allocation5 + $0xa8] sm:$0xff]
    %v195 = vld [vmem:[#allocation5 + $0xb0] sm:$0xff]
    %v196 = vld [vmem:[#allocation5 + $0xb8] sm:$0xff]
    %v197 = vld [vmem:[#allocation5 + $0xc0] sm:$0xff]
    %v198 = vld [vmem:[#allocation5 + $0xc8] sm:$0xff]
    %v199 = vld [vmem:[#allocation5 + $0xd0] sm:$0xff]
    %v200 = vld [vmem:[#allocation5 + $0xd8] sm:$0xff]
    %v201 = vld [vmem:[#allocation5 + $0xe0] sm:$0xff]
    %v202 = vld [vmem:[#allocation5 + $0xe8] sm:$0xff]
    %v203 = vld [vmem:[#allocation5 + $0xf0] sm:$0xff]
    %v204 = vld [vmem:[#allocation5 + $0xf8] sm:$0xff]
    %v205 = vld [vmem:[%s4] sm:$0x1]
    %206 = vmatprep.subr.mxu0 0.0
    %207 = vmatpush1.msra.mxu0 %v173
    %208 = vmatprep.subr.mxu0 0.0
    %209 = vmatpush1.msra.mxu0 %v174
    %210 = vmatprep.subr.mxu0 0.0
    %211 = vmatpush1.msra.mxu0 %v175
    %212 = vmatprep.subr.mxu0 0.0
    %213 = vmatpush1.msra.mxu0 %v176
    %214 = vmatprep.subr.mxu0 0.0
    %215 = vmatpush1.msra.mxu0 %v177
    %216 = vmatprep.subr.mxu0 0.0
    %217 = vmatpush1.msra.mxu0 %v178
    %218 = vmatprep.subr.mxu0 0.0
    %219 = vmatpush1.msra.mxu0 %v179
    %220 = vmatprep.subr.mxu0 0.0
    %221 = vmatpush1.msra.mxu0 %v180
    %222 = vmatprep.subr.mxu0 0.0
    %223 = vmatpush1.msra.mxu0 %v181
    %224 = vmatprep.subr.mxu0 0.0
    %225 = vmatpush1.msra.mxu0 %v182
    %226 = vmatprep.subr.mxu0 0.0
    %227 = vmatpush1.msra.mxu0 %v183
    %228 = vmatprep.subr.mxu0 0.0
    %229 = vmatpush1.msra.mxu0 %v184
    %230 = vmatprep.subr.mxu0 0.0
    %231 = vmatpush1.msra.mxu0 %v185
    %232 = vmatprep.subr.mxu0 0.0
    %233 = vmatpush1.msra.mxu0 %v186
    %234 = vmatprep.subr.mxu0 0.0
    %235 = vmatpush1.msra.mxu0 %v187
    %236 = vmatprep.subr.mxu0 0.0
    %237 = vmatpush1.msra.mxu0 %v188
    %238 = vmatprep.subr.mxu0 0.0
    %239 = vmatpush1.msra.mxu0 %v189
    %240 = vmatprep.subr.mxu0 0.0
    %241 = vmatpush1.msra.mxu0 %v190
    %242 = vmatprep.subr.mxu0 0.0
    %243 = vmatpush1.msra.mxu0 %v191
    %244 = vmatprep.subr.mxu0 0.0
    %245 = vmatpush1.msra.mxu0 %v192
    %246 = vmatprep.subr.mxu0 0.0
    %247 = vmatpush1.msra.mxu0 %v193
    %248 = vmatprep.subr.mxu0 0.0
    %249 = vmatpush1.msra.mxu0 %v194
    %250 = vmatprep.subr.mxu0 0.0
    %251 = vmatpush1.msra.mxu0 %v195
    %252 = vmatprep.subr.mxu0 0.0
    %253 = vmatpush1.msra.mxu0 %v196
    %254 = vmatprep.subr.mxu0 0.0
    %255 = vmatpush1.msra.mxu0 %v197
    %256 = vmatprep.subr.mxu0 0.0
    %257 = vmatpush1.msra.mxu0 %v198
    %258 = vmatprep.subr.mxu0 0.0
    %259 = vmatpush1.msra.mxu0 %v199
    %260 = vmatprep.subr.mxu0 0.0
    %261 = vmatpush1.msra.mxu0 %v200
    %262 = vmatprep.subr.mxu0 0.0
    %263 = vmatpush1.msra.mxu0 %v201
    %264 = vmatprep.subr.mxu0 0.0
    %265 = vmatpush1.msra.mxu0 %v202
    %266 = vmatprep.subr.mxu0 0.0
    %267 = vmatpush1.msra.mxu0 %v203
    %268 = vmatprep.subr.mxu0 0.0
    %269 = vmatpush1.msra.mxu0 %v204
    %270 = vmatprep.mubr.f32.mxu0 %v172
    %271 = vmatmul.mubr.f32.gmra.mrb[0].mxu0 %v171
    %v272 = vpop.f32.mrb[0].mxu0
    %v273 = vadd.f32 %v205, %v272
    %v274 = vpop.f32.mrb[0].mxu0
    %275 = vdwg.mxu0
    %v276 = vmax.f32 %v273, 0.0
    %v277 = vld [vmem:[%s5] sm:$0xff]
    %v278 = vld [vmem:[%s5 + $0x8] sm:$0xff]
    %v279 = vld [vmem:[%s5 + $0x10] sm:$0xff]
    %v280 = vld [vmem:[%s5 + $0x18] sm:$0xff]
    %v281 = vld [vmem:[%s5 + $0x20] sm:$0xff]
    %v282 = vld [vmem:[%s5 + $0x28] sm:$0xff]
    %v283 = vld [vmem:[%s5 + $0x30] sm:$0xff]
    %v284 = vld [vmem:[%s5 + $0x38] sm:$0xff]
    %v285 = vld [vmem:[%s5 + $0x40] sm:$0xff]
    %v286 = vld [vmem:[%s5 + $0x48] sm:$0xff]
    %v287 = vld [vmem:[%s5 + $0x50] sm:$0xff]
    %v288 = vld [vmem:[%s5 + $0x58] sm:$0xff]
    %v289 = vld [vmem:[%s5 + $0x60] sm:$0xff]
    %v290 = vld [vmem:[%s5 + $0x68] sm:$0xff]
    %v291 = vld [vmem:[%s5 + $0x70] sm:$0xff]
    %v292 = vld [vmem:[%s5 + $0x78] sm:$0xff]
    %v293 = vld [vmem:[%s6] sm:$0x1]
    %294 = vmatprep.subr.mxu0 0.0
    %295 = vmatpush1.msra.mxu0 %v277
    %296 = vmatprep.subr.mxu0 0.0
    %297 = vmatpush1.msra.mxu0 %v278
    %298 = vmatprep.subr.mxu0 0.0
    %299 = vmatpush1.msra.mxu0 %v279
    %300 = vmatprep.subr.mxu0 0.0
    %301 = vmatpush1.msra.mxu0 %v280
    %302 = vmatprep.subr.mxu0 0.0
    %303 = vmatpush1.msra.mxu0 %v281
    %304 = vmatprep.subr.mxu0 0.0
    %305 = vmatpush1.msra.mxu0 %v282
    %306 = vmatprep.subr.mxu0 0.0
    %307 = vmatpush1.msra.mxu0 %v283
    %308 = vmatprep.subr.mxu0 0.0
    %309 = vmatpush1.msra.mxu0 %v284
    %310 = vmatprep.subr.mxu0 0.0
    %311 = vmatpush1.msra.mxu0 %v285
    %312 = vmatprep.subr.mxu0 0.0
    %313 = vmatpush1.msra.mxu0 %v286
    %314 = vmatprep.subr.mxu0 0.0
    %315 = vmatpush1.msra.mxu0 %v287
    %316 = vmatprep.subr.mxu0 0.0
    %317 = vmatpush1.msra.mxu0 %v288
    %318 = vmatprep.subr.mxu0 0.0
    %319 = vmatpush1.msra.mxu0 %v289
    %320 = vmatprep.subr.mxu0 0.0
    %321 = vmatpush1.msra.mxu0 %v290
    %322 = vmatprep.subr.mxu0 0.0
    %323 = vmatpush1.msra.mxu0 %v291
    %324 = vmatprep.subr.mxu0 0.0
    %325 = vmatpush1.msra.mxu0 %v292
    %326 = vmatprep.subr.mxu0 0.0
    %327 = vmatpush1.msra.mxu0 0.0
    %328 = vmatprep.subr.mxu0 0.0
    %329 = vmatpush1.msra.mxu0 0.0
    %330 = vmatprep.subr.mxu0 0.0
    %331 = vmatpush1.msra.mxu0 0.0
    %332 = vmatprep.subr.mxu0 0.0
    %333 = vmatpush1.msra.mxu0 0.0
    %334 = vmatprep.subr.mxu0 0.0
    %335 = vmatpush1.msra.mxu0 0.0
    %336 = vmatprep.subr.mxu0 0.0
    %337 = vmatpush1.msra.mxu0 0.0
    %338 = vmatprep.subr.mxu0 0.0
    %339 = vmatpush1.msra.mxu0 0.0
    %340 = vmatprep.subr.mxu0 0.0
    %341 = vmatpush1.msra.mxu0 0.0
    %342 = vmatprep.subr.mxu0 0.0
    %343 = vmatpush1.msra.mxu0 0.0
    %344 = vmatprep.subr.mxu0 0.0
    %345 = vmatpush1.msra.mxu0 0.0
    %346 = vmatprep.subr.mxu0 0.0
    %347 = vmatpush1.msra.mxu0 0.0
    %348 = vmatprep.subr.mxu0 0.0
    %349 = vmatpush1.msra.mxu0 0.0
    %350 = vmatprep.subr.mxu0 0.0
    %351 = vmatpush1.msra.mxu0 0.0
    %352 = vmatprep.subr.mxu0 0.0
    %353 = vmatpush1.msra.mxu0 0.0
    %354 = vmatprep.subr.mxu0 0.0
    %355 = vmatpush1.msra.mxu0 0.0
    %356 = vmatprep.subr.mxu0 0.0
    %357 = vmatpush1.msra.mxu0 0.0
    %358 = vmatprep.mubr.f32.mxu0 0.0
    %359 = vmatmul.mubr.f32.gmra.mrb[0].mxu0 %v276
    %v360 = vpop.f32.mrb[0].mxu0
    %v361 = vadd.f32 %v293, %v360
    %v362 = vpop.f32.mrb[0].mxu0
    %363 = vdwg.mxu0
    %vm364 = vcmask 57344
    %365 = vst.msk [vmem:[#allocation7] sm:$0x1] %vm364, %v361
    // Predicated region
    $region38: #{tpu_custom_call.1} parent=1 // pred_check
      _
    $region39: #{tpu_custom_call.1} parent=1 // pred_check_branch
      %367 = sbr.rel (0) target = $region41
    $region40: #{tpu_custom_call.1} parent=1 // pred_region
      %s369 = ssub.s32 16, 16
      %370 = vsyncadd [#allocation4], %s369
      %s372 = sshll.u32 [#allocation7], 4
      %s373 = int_to_ptr.vmem [resolvable:$true] %s372
      %375 = dma.vmem_to_hbm [thread:$0]  %s373, 16, %s7, [#allocation4]
    $region41: #{tpu_custom_call.1} parent=1 // pred_fallthru
      _
    // Predicated region
    $region42: #{tpu_custom_call.1} parent=1 // pred_check
      _
    $region43: #{tpu_custom_call.1} parent=1 // pred_check_branch
      %377 = sbr.rel (0) target = $region45
    $region44: #{tpu_custom_call.1} parent=1 // pred_region
      %378 = dma.done [#allocation4], 16
    $region45: #{tpu_custom_call.1} parent=1 // pred_fallthru
      _
    %379 = vsyncpa [#allocation3], 1
    %380 = vsyncpa [#allocation6], 1
    %381 = vsyncpa [#allocation4], 1

</llo_original>
